<compile_context>
chip_gen: v5e
topology: v5e:2x2
jax: 0.10.0
libtpu: 0.0.40
codegen_flags: <defaults>
</compile_context>

<pallas_src>
import functools

import jax
import jax.numpy as jnp
import numpy as np
from jax import lax
from jax.experimental import pallas as pl
from jax.experimental.pallas import tpu as pltpu

_STATS_W = 128  # lane-dense stats row: [sum | sumsq | zero pad] (128 lanes)


def _tap_geometry(k, d, H, W):
    """Static per-tap (roll shift, boundary mask, all-interior flag).

    shifts: k*k positive lane shifts so that pltpu.roll(x, shift, axis=-1)
            gives result[i] = x[(i + dy*W + dx) mod HW] for tap (dy, dx).
    masks:  (k*k, HW) float32; mask[t, h*W+w] == 1 iff (h+dy, w+dx) is inside
            the image (zeroes the wrap-around values introduced by the roll).
    ones:   per-tap bool; True -> mask is all ones, kernel skips the multiply.
    """
    p = (k - 1) // 2 * d
    HW = H * W
    hw = np.arange(HW)
    hh, ww = hw // W, hw % W
    shifts, masks, ones = [], [], []
    for ky in range(k):
        for kx in range(k):
            dy, dx = ky * d - p, kx * d - p
            s = (dy * W + dx) % HW
            shifts.append((HW - s) % HW)
            valid = ((hh + dy >= 0) & (hh + dy < H) &
                     (ww + dx >= 0) & (ww + dx < W)).astype(np.float32)
            masks.append(valid)
            ones.append(bool(valid.all()))
    return tuple(shifts), jnp.asarray(np.stack(masks, axis=0)), tuple(ones)


def _im2col_t(xf, masks, *, shifts, ones):
    """Build im2col^T (k*k*Cp, HW) for a 'same' conv.

    xf: (Cp, HW) activation, Cp a multiple of 8, spatial flattened on lanes.
    Each tap is an XLU lane rotation of xf; boundary wrap-around is zeroed by
    the precomputed (1, HW) tap mask (skipped for all-interior taps).  Every
    tap slot is an aligned 8-sublane tile, so the concatenate is unmasked.
    """
    taps = []
    for t, s in enumerate(shifts):
        rolled = xf if s == 0 else pltpu.roll(xf, shift=s, axis=1)
        if not ones[t]:
            rolled = rolled * masks[t:t + 1, :]
        taps.append(rolled)
    return jnp.concatenate(taps, axis=0)


def _conv1_stats_kernel(x_ref, w1_ref, mask_ref, y_ref, stats_ref,
                        *, shifts, ones):
    """conv1 (bias dropped: cancelled by BN) + lane-dense per-batch BN stats."""
    xf = x_ref[0]                                                # (Cp, HW)
    cols = _im2col_t(xf, mask_ref[...], shifts=shifts, ones=ones)
    y = jnp.dot(w1_ref[...], cols, preferred_element_type=jnp.float32)
    y_ref[0] = y                                                 # (Cp, HW)
    s1 = jnp.sum(y, axis=1, keepdims=True)                       # (Cp, 1)
    s2 = jnp.sum(y * y, axis=1, keepdims=True)                   # (Cp, 1)
    pad = jnp.zeros((y.shape[0], _STATS_W - 2), jnp.float32)
    stats_ref[0] = jnp.concatenate([s1, s2, pad], axis=1)        # (Cp, 128)


def _bn_relu_conv2_kernel(y_ref, x_ref, w2_ref, b2_ref, gamma_ref, beta_ref,
                          stats_ref, mask_ref, o_ref,
                          *, shifts, ones, inv_count, eps):
    """Fused BN (global stats reduced in-kernel) -> ReLU -> conv2 -> +x."""
    # TODO(synk): E[y^2]-E[y]^2 can cancel catastrophically at real scales;
    # switch to a shifted / Welford-style reduction if needed.
    tot = jnp.sum(stats_ref[...], axis=0)                        # (Cp, 128)
    mean = tot[:, 0:1] * inv_count                               # (Cp, 1)
    var = tot[:, 1:2] * inv_count - mean * mean
    scale = gamma_ref[...] * lax.rsqrt(var + eps)                # EUP
    shift = beta_ref[...] - mean * scale

    act = jnp.maximum(y_ref[0] * scale + shift, 0.0)             # (Cp, HW)
    cols = _im2col_t(act, mask_ref[...], shifts=shifts, ones=ones)
    out = jnp.dot(w2_ref[...], cols, preferred_element_type=jnp.float32)
    o_ref[0] = out + b2_ref[...] + x_ref[0]


def resnet_block_bn(x_nchw, params, *, k, dilation, eps=1e-5):
    """x_nchw: (N, C, H, W) float32 -> (N, C, H, W) float32."""
    d0, d1 = dilation
    w1, _b1, gamma, beta, w2, b2 = params   # conv1 bias unused (cancelled by BN)
    N, C, H, W = x_nchw.shape
    HW = H * W
    Cp = max(8, -(-C // 8) * 8)             # pad channels to a sublane tile
    pc = Cp - C

    xf = jnp.pad(x_nchw.astype(jnp.float32), ((0, 0), (0, pc), (0, 0), (0, 0)))
    xf = xf.reshape(N, Cp, HW)

    def prep_w(w):
        # (Cout, Cin, kh, kw) -> zero-pad channels -> (Cp, k*k*Cp), tap-major.
        wp = jnp.pad(w.astype(jnp.float32), ((0, pc), (0, pc), (0, 0), (0, 0)))
        return jnp.transpose(wp, (0, 2, 3, 1)).reshape(Cp, k * k * Cp)

    w1r, w2r = prep_w(w1), prep_w(w2)
    gam = jnp.pad(gamma.astype(jnp.float32), (0, pc)).reshape(Cp, 1)
    bet = jnp.pad(beta.astype(jnp.float32), (0, pc)).reshape(Cp, 1)
    b2r = jnp.pad(b2.astype(jnp.float32), (0, pc)).reshape(Cp, 1)

    shifts1, masks1, ones1 = _tap_geometry(k, d0, H, W)
    shifts2, masks2, ones2 = _tap_geometry(k, d1, H, W)

    cparams = pltpu.CompilerParams(
        dimension_semantics=("parallel",),        # batch grid -> both TCs on v7x
        vmem_limit_bytes=32 * 1024 * 1024,        # covers v5e's 16 MiB default
    )
    batch_spec = pl.BlockSpec((1, Cp, HW), lambda n: (n, 0, 0))

    def const_spec(a):                            # small grid-invariant operand
        nd = a.ndim
        return pl.BlockSpec(a.shape, lambda n, _nd=nd: (0,) * _nd)

    # --- phase 1: conv1 + partial BN statistics ------------------------------
    y, stats = pl.pallas_call(
        functools.partial(_conv1_stats_kernel, shifts=shifts1, ones=ones1),
        grid=(N,),
        in_specs=[batch_spec, const_spec(w1r), const_spec(masks1)],
        out_specs=(batch_spec,
                   pl.BlockSpec((1, Cp, _STATS_W), lambda n: (n, 0, 0))),
        out_shape=(jax.ShapeDtypeStruct((N, Cp, HW), jnp.float32),
                   jax.ShapeDtypeStruct((N, Cp, _STATS_W), jnp.float32)),
        compiler_params=cparams,
    )(xf, w1r, masks1)

    # --- phase 2: BN (stats reduced in-kernel) + ReLU + conv2 + residual ------
    out = pl.pallas_call(
        functools.partial(_bn_relu_conv2_kernel, shifts=shifts2, ones=ones2,
                          inv_count=float(1.0 / (N * HW)), eps=float(eps)),
        grid=(N,),
        in_specs=[batch_spec, batch_spec, const_spec(w2r), const_spec(b2r),
                  const_spec(gam), const_spec(bet), const_spec(stats),
                  const_spec(masks2)],
        out_specs=batch_spec,
        out_shape=jax.ShapeDtypeStruct((N, Cp, HW), jnp.float32),
        compiler_params=cparams,
        input_output_aliases={0: 0},              # reuse dead y buffer as out
    )(y, xf, w2r, b2r, gam, bet, stats, masks2)

    return out.reshape(N, Cp, H, W)[:, :C]


def ref_forward(x, params, *, k, dilation, eps=1e-5):
    """Pure-JAX reference matching the PyTorch module (training-mode BN)."""
    d0, d1 = dilation
    w1, b1, gamma, beta, w2, b2 = params

    def conv(y, w, b, d):
        p = (k - 1) // 2 * d
        out = jax.lax.conv_general_dilated(
            y, w, window_strides=(1, 1), padding=[(p, p), (p, p)],
            rhs_dilation=(d, d), dimension_numbers=("NCHW", "OIHW", "NCHW"))
        return out + b[None, :, None, None]

    y = conv(x, w1, b1, d0)
    mean = jnp.mean(y, axis=(0, 2, 3), keepdims=True)
    var = jnp.mean((y - mean) ** 2, axis=(0, 2, 3), keepdims=True)
    y = gamma[None, :, None, None] * (y - mean) / jnp.sqrt(var + eps) \
        + beta[None, :, None, None]
    y = jnp.maximum(y, 0.0)
    y = conv(y, w2, b2, d1)
    return y + x


if __name__ == "__main__":
    N, C, H, W = 2, 4, 16, 16
    k = 3
    dilation = (1, 2)

    key = jax.random.PRNGKey(0)
    k_x, k_w1, k_b1, k_w2, k_b2 = jax.random.split(key, 5)

    x = jax.random.normal(k_x, (N, C, H, W), jnp.float32)
    w1 = 0.1 * jax.random.normal(k_w1, (C, C, k, k), jnp.float32)   # (Co,Ci,kh,kw)
    b1 = 0.1 * jax.random.normal(k_b1, (C,), jnp.float32)
    gamma = jnp.ones((C,), jnp.float32)
    beta = jnp.zeros((C,), jnp.float32)
    w2 = 0.1 * jax.random.normal(k_w2, (C, C, k, k), jnp.float32)
    b2 = 0.1 * jax.random.normal(k_b2, (C,), jnp.float32)
    params = (w1, b1, gamma, beta, w2, b2)

    fwd = jax.jit(functools.partial(resnet_block_bn, k=k, dilation=dilation))
    out = jax.block_until_ready(fwd(x, params))

    ref = jax.block_until_ready(ref_forward(x, params, k=k, dilation=dilation))
    np.testing.assert_allclose(np.asarray(out), np.asarray(ref),
                               rtol=1e-4, atol=1e-4)
    print("KERNEL_OK")
</pallas_src>

<mosaic_0001>
module attributes {stable_mosaic.version = 11 : i64} {
  func.func @_conv1_stats_kernel(%arg0: i32, %arg1: memref<1x8x256xf32, #tpu.memory_space<vmem>>, %arg2: memref<8x72xf32, #tpu.memory_space<vmem>>, %arg3: memref<9x256xf32, #tpu.memory_space<vmem>>, %arg4: memref<1x8x256xf32, #tpu.memory_space<vmem>>, %arg5: memref<1x8x128xf32, #tpu.memory_space<vmem>>) attributes {dimension_semantics = [#tpu.dimension_semantics<parallel>], iteration_bounds = array<i64: 2>, scalar_prefetch = 0 : i64, scratch_operands = 0 : i64, tpu.core_type = #tpu.core_type<tc>, window_params = [{transform_indices = @transform_0, window_bounds = array<i64: 1, 8, 256>}, {pipeline_mode = #tpu.pipeline_mode<synchronous>, transform_indices = @transform_1, window_bounds = array<i64: 8, 72>}, {pipeline_mode = #tpu.pipeline_mode<synchronous>, transform_indices = @transform_2, window_bounds = array<i64: 9, 256>}, {transform_indices = @transform_3, window_bounds = array<i64: 1, 8, 256>}, {transform_indices = @transform_4, window_bounds = array<i64: 1, 8, 128>}]} {
    %c0 = arith.constant 0 : index
    %c0_0 = arith.constant 0 : index
    %c0_1 = arith.constant 0 : index
    %0 = vector.load %arg1[%c0, %c0_0, %c0_1] : memref<1x8x256xf32, #tpu.memory_space<vmem>>, vector<1x8x256xf32>
    %1 = vector.shape_cast %0 : vector<1x8x256xf32> to vector<8x256xf32>
    %c0_2 = arith.constant 0 : index
    %c0_3 = arith.constant 0 : index
    %2 = vector.load %arg3[%c0_2, %c0_3] : memref<9x256xf32, #tpu.memory_space<vmem>>, vector<9x256xf32>
    %c17_i32 = arith.constant 17 : i32
    %3 = tpu.dynamic_rotate %1 by %c17_i32 dim 1 : vector<8x256xf32>, i32 -> vector<8x256xf32>
    %4 = vector.extract_strided_slice %2 {offsets = [0, 0], sizes = [1, 256], strides = [1, 1]} : vector<9x256xf32> to vector<1x256xf32>
    %5 = vector.broadcast %4 : vector<1x256xf32> to vector<8x256xf32>
    %6 = arith.mulf %3, %5 : vector<8x256xf32>
    %c16_i32 = arith.constant 16 : i32
    %7 = tpu.dynamic_rotate %1 by %c16_i32 dim 1 : vector<8x256xf32>, i32 -> vector<8x256xf32>
    %8 = vector.extract_strided_slice %2 {offsets = [1, 0], sizes = [1, 256], strides = [1, 1]} : vector<9x256xf32> to vector<1x256xf32>
    %9 = vector.broadcast %8 : vector<1x256xf32> to vector<8x256xf32>
    %10 = arith.mulf %7, %9 : vector<8x256xf32>
    %c15_i32 = arith.constant 15 : i32
    %11 = tpu.dynamic_rotate %1 by %c15_i32 dim 1 : vector<8x256xf32>, i32 -> vector<8x256xf32>
    %12 = vector.extract_strided_slice %2 {offsets = [2, 0], sizes = [1, 256], strides = [1, 1]} : vector<9x256xf32> to vector<1x256xf32>
    %13 = vector.broadcast %12 : vector<1x256xf32> to vector<8x256xf32>
    %14 = arith.mulf %11, %13 : vector<8x256xf32>
    %c1_i32 = arith.constant 1 : i32
    %15 = tpu.dynamic_rotate %1 by %c1_i32 dim 1 : vector<8x256xf32>, i32 -> vector<8x256xf32>
    %16 = vector.extract_strided_slice %2 {offsets = [3, 0], sizes = [1, 256], strides = [1, 1]} : vector<9x256xf32> to vector<1x256xf32>
    %17 = vector.broadcast %16 : vector<1x256xf32> to vector<8x256xf32>
    %18 = arith.mulf %15, %17 : vector<8x256xf32>
    %c255_i32 = arith.constant 255 : i32
    %19 = tpu.dynamic_rotate %1 by %c255_i32 dim 1 : vector<8x256xf32>, i32 -> vector<8x256xf32>
    %20 = vector.extract_strided_slice %2 {offsets = [5, 0], sizes = [1, 256], strides = [1, 1]} : vector<9x256xf32> to vector<1x256xf32>
    %21 = vector.broadcast %20 : vector<1x256xf32> to vector<8x256xf32>
    %22 = arith.mulf %19, %21 : vector<8x256xf32>
    %c241_i32 = arith.constant 241 : i32
    %23 = tpu.dynamic_rotate %1 by %c241_i32 dim 1 : vector<8x256xf32>, i32 -> vector<8x256xf32>
    %24 = vector.extract_strided_slice %2 {offsets = [6, 0], sizes = [1, 256], strides = [1, 1]} : vector<9x256xf32> to vector<1x256xf32>
    %25 = vector.broadcast %24 : vector<1x256xf32> to vector<8x256xf32>
    %26 = arith.mulf %23, %25 : vector<8x256xf32>
    %c240_i32 = arith.constant 240 : i32
    %27 = tpu.dynamic_rotate %1 by %c240_i32 dim 1 : vector<8x256xf32>, i32 -> vector<8x256xf32>
    %28 = vector.extract_strided_slice %2 {offsets = [7, 0], sizes = [1, 256], strides = [1, 1]} : vector<9x256xf32> to vector<1x256xf32>
    %29 = vector.broadcast %28 : vector<1x256xf32> to vector<8x256xf32>
    %30 = arith.mulf %27, %29 : vector<8x256xf32>
    %c239_i32 = arith.constant 239 : i32
    %31 = tpu.dynamic_rotate %1 by %c239_i32 dim 1 : vector<8x256xf32>, i32 -> vector<8x256xf32>
    %32 = vector.extract_strided_slice %2 {offsets = [8, 0], sizes = [1, 256], strides = [1, 1]} : vector<9x256xf32> to vector<1x256xf32>
    %33 = vector.broadcast %32 : vector<1x256xf32> to vector<8x256xf32>
    %34 = arith.mulf %31, %33 : vector<8x256xf32>
    %35 = tpu.concatenate %6, %10, %14, %18, %1, %22, %26, %30, %34 in 0 : vector<8x256xf32>, vector<8x256xf32>, vector<8x256xf32>, vector<8x256xf32>, vector<8x256xf32>, vector<8x256xf32>, vector<8x256xf32>, vector<8x256xf32>, vector<8x256xf32> -> vector<72x256xf32>
    %c0_4 = arith.constant 0 : index
    %c0_5 = arith.constant 0 : index
    %36 = vector.load %arg2[%c0_4, %c0_5] : memref<8x72xf32, #tpu.memory_space<vmem>>, vector<8x72xf32>
    %cst = arith.constant dense<0.000000e+00> : vector<8x256xf32>
    %37 = tpu.matmul %36, %35, %cst {dimension_numbers = #tpu.dot_dimension_numbers<[1], [0], [0], [1], [0, 0, 1, 1], [], []>} : vector<8x72xf32>, vector<72x256xf32>, vector<8x256xf32> -> vector<8x256xf32>
    %c0_6 = arith.constant 0 : index
    %c0_7 = arith.constant 0 : index
    %c0_8 = arith.constant 0 : index
    %38 = vector.load %arg4[%c0_6, %c0_7, %c0_8] : memref<1x8x256xf32, #tpu.memory_space<vmem>>, vector<1x8x256xf32>
    %39 = vector.shape_cast %38 : vector<1x8x256xf32> to vector<8x256xf32>
    %40 = vector.shape_cast %37 : vector<8x256xf32> to vector<1x8x256xf32>
    tpu.vector_store %arg4[%c0_6, %c0_7, %c0_8], %40 {strides = array<i32>} : memref<1x8x256xf32, #tpu.memory_space<vmem>>, vector<1x8x256xf32>,
    %cst_9 = arith.constant dense<0.000000e+00> : vector<8xf32>
    %41 = vector.multi_reduction <add>, %37, %cst_9 [1] : vector<8x256xf32> to vector<8xf32>
    %42 = vector.shape_cast %41 : vector<8xf32> to vector<8x1xf32>
    %43 = arith.mulf %37, %37 : vector<8x256xf32>
    %cst_10 = arith.constant dense<0.000000e+00> : vector<8xf32>
    %44 = vector.multi_reduction <add>, %43, %cst_10 [1] : vector<8x256xf32> to vector<8xf32>
    %45 = vector.shape_cast %44 : vector<8xf32> to vector<8x1xf32>
    %cst_11 = arith.constant 0.000000e+00 : f32
    %46 = vector.broadcast %cst_11 : f32 to vector<8x126xf32>
    %47 = tpu.concatenate %42, %45, %46 in 1 : vector<8x1xf32>, vector<8x1xf32>, vector<8x126xf32> -> vector<8x128xf32>
    %c0_12 = arith.constant 0 : index
    %c0_13 = arith.constant 0 : index
    %c0_14 = arith.constant 0 : index
    %48 = vector.load %arg5[%c0_12, %c0_13, %c0_14] : memref<1x8x128xf32, #tpu.memory_space<vmem>>, vector<1x8x128xf32>
    %49 = vector.shape_cast %48 : vector<1x8x128xf32> to vector<8x128xf32>
    %50 = vector.shape_cast %47 : vector<8x128xf32> to vector<1x8x128xf32>
    tpu.vector_store %arg5[%c0_12, %c0_13, %c0_14], %50 {strides = array<i32>} : memref<1x8x128xf32, #tpu.memory_space<vmem>>, vector<1x8x128xf32>,
    return
  }
  func.func @transform_0(%arg0: i32) -> (i32, i32, i32) {
    %c0_i32 = arith.constant 0 : i32
    %c0_i32_0 = arith.constant 0 : i32
    %c0_i32_1 = arith.constant 0 : i32
    return %arg0, %c0_i32, %c0_i32_0 : i32, i32, i32
  }
  func.func @transform_1(%arg0: i32) -> (i32, i32) {
    %c0_i32 = arith.constant 0 : i32
    %c0_i32_0 = arith.constant 0 : i32
    %c0_i32_1 = arith.constant 0 : i32
    return %c0_i32, %c0_i32_0 : i32, i32
  }
  func.func @transform_2(%arg0: i32) -> (i32, i32) {
    %c0_i32 = arith.constant 0 : i32
    %c0_i32_0 = arith.constant 0 : i32
    %c0_i32_1 = arith.constant 0 : i32
    return %c0_i32, %c0_i32_0 : i32, i32
  }
  func.func @transform_3(%arg0: i32) -> (i32, i32, i32) {
    %c0_i32 = arith.constant 0 : i32
    %c0_i32_0 = arith.constant 0 : i32
    %c0_i32_1 = arith.constant 0 : i32
    return %arg0, %c0_i32, %c0_i32_0 : i32, i32, i32
  }
  func.func @transform_4(%arg0: i32) -> (i32, i32, i32) {
    %c0_i32 = arith.constant 0 : i32
    %c0_i32_0 = arith.constant 0 : i32
    %c0_i32_1 = arith.constant 0 : i32
    return %arg0, %c0_i32, %c0_i32_0 : i32, i32, i32
  }
}

module attributes {stable_mosaic.version = 11 : i64} {
  func.func @_bn_relu_conv2_kernel(%arg0: i32, %arg1: memref<1x8x256xf32, #tpu.memory_space<vmem>>, %arg2: memref<1x8x256xf32, #tpu.memory_space<vmem>>, %arg3: memref<8x72xf32, #tpu.memory_space<vmem>>, %arg4: memref<8x1xf32, #tpu.memory_space<vmem>>, %arg5: memref<8x1xf32, #tpu.memory_space<vmem>>, %arg6: memref<8x1xf32, #tpu.memory_space<vmem>>, %arg7: memref<2x8x128xf32, #tpu.memory_space<vmem>>, %arg8: memref<9x256xf32, #tpu.memory_space<vmem>>, %arg9: memref<1x8x256xf32, #tpu.memory_space<vmem>>) attributes {dimension_semantics = [#tpu.dimension_semantics<parallel>], iteration_bounds = array<i64: 2>, scalar_prefetch = 0 : i64, scratch_operands = 0 : i64, tpu.core_type = #tpu.core_type<tc>, window_params = [{transform_indices = @transform_0, window_bounds = array<i64: 1, 8, 256>}, {transform_indices = @transform_1, window_bounds = array<i64: 1, 8, 256>}, {pipeline_mode = #tpu.pipeline_mode<synchronous>, transform_indices = @transform_2, window_bounds = array<i64: 8, 72>}, {pipeline_mode = #tpu.pipeline_mode<synchronous>, transform_indices = @transform_3, window_bounds = array<i64: 8, 1>}, {pipeline_mode = #tpu.pipeline_mode<synchronous>, transform_indices = @transform_4, window_bounds = array<i64: 8, 1>}, {pipeline_mode = #tpu.pipeline_mode<synchronous>, transform_indices = @transform_5, window_bounds = array<i64: 8, 1>}, {pipeline_mode = #tpu.pipeline_mode<synchronous>, transform_indices = @transform_6, window_bounds = array<i64: 2, 8, 128>}, {pipeline_mode = #tpu.pipeline_mode<synchronous>, transform_indices = @transform_7, window_bounds = array<i64: 9, 256>}, {transform_indices = @transform_8, window_bounds = array<i64: 1, 8, 256>}]} {
    %c0 = arith.constant 0 : index
    %c0_0 = arith.constant 0 : index
    %c0_1 = arith.constant 0 : index
    %0 = vector.load %arg7[%c0, %c0_0, %c0_1] : memref<2x8x128xf32, #tpu.memory_space<vmem>>, vector<2x8x128xf32>
    %cst = arith.constant dense<0.000000e+00> : vector<8x128xf32>
    %1 = vector.multi_reduction <add>, %0, %cst [0] : vector<2x8x128xf32> to vector<8x128xf32>
    %2 = vector.extract_strided_slice %1 {offsets = [0, 0], sizes = [8, 1], strides = [1, 1]} : vector<8x128xf32> to vector<8x1xf32>
    %cst_2 = arith.constant 0.001953125 : f32
    %3 = vector.broadcast %cst_2 : f32 to vector<8x1xf32>
    %4 = arith.mulf %2, %3 : vector<8x1xf32>
    %5 = vector.extract_strided_slice %1 {offsets = [0, 1], sizes = [8, 1], strides = [1, 1]} : vector<8x128xf32> to vector<8x1xf32>
    %cst_3 = arith.constant 0.001953125 : f32
    %6 = vector.broadcast %cst_3 : f32 to vector<8x1xf32>
    %7 = arith.mulf %5, %6 : vector<8x1xf32>
    %8 = arith.mulf %4, %4 : vector<8x1xf32>
    %9 = arith.subf %7, %8 : vector<8x1xf32>
    %c0_4 = arith.constant 0 : index
    %c0_5 = arith.constant 0 : index
    %10 = vector.load %arg5[%c0_4, %c0_5] : memref<8x1xf32, #tpu.memory_space<vmem>>, vector<8x1xf32>
    %cst_6 = arith.constant 9.99999974E-6 : f32
    %11 = vector.broadcast %cst_6 : f32 to vector<8x1xf32>
    %12 = arith.addf %9, %11 : vector<8x1xf32>
    %13 = math.rsqrt %12 : vector<8x1xf32>
    %14 = arith.mulf %10, %13 : vector<8x1xf32>
    %c0_7 = arith.constant 0 : index
    %c0_8 = arith.constant 0 : index
    %15 = vector.load %arg6[%c0_7, %c0_8] : memref<8x1xf32, #tpu.memory_space<vmem>>, vector<8x1xf32>
    %16 = arith.mulf %4, %14 : vector<8x1xf32>
    %17 = arith.subf %15, %16 : vector<8x1xf32>
    %c0_9 = arith.constant 0 : index
    %c0_10 = arith.constant 0 : index
    %c0_11 = arith.constant 0 : index
    %18 = vector.load %arg1[%c0_9, %c0_10, %c0_11] : memref<1x8x256xf32, #tpu.memory_space<vmem>>, vector<1x8x256xf32>
    %19 = vector.shape_cast %18 : vector<1x8x256xf32> to vector<8x256xf32>
    %20 = vector.broadcast %14 : vector<8x1xf32> to vector<8x256xf32>
    %21 = arith.mulf %19, %20 : vector<8x256xf32>
    %22 = vector.broadcast %17 : vector<8x1xf32> to vector<8x256xf32>
    %23 = arith.addf %21, %22 : vector<8x256xf32>
    %cst_12 = arith.constant 0.000000e+00 : f32
    %24 = vector.broadcast %cst_12 : f32 to vector<8x256xf32>
    %25 = arith.maximumf %23, %24 : vector<8x256xf32>
    %c0_13 = arith.constant 0 : index
    %c0_14 = arith.constant 0 : index
    %26 = vector.load %arg8[%c0_13, %c0_14] : memref<9x256xf32, #tpu.memory_space<vmem>>, vector<9x256xf32>
    %c34_i32 = arith.constant 34 : i32
    %27 = tpu.dynamic_rotate %25 by %c34_i32 dim 1 : vector<8x256xf32>, i32 -> vector<8x256xf32>
    %28 = vector.extract_strided_slice %26 {offsets = [0, 0], sizes = [1, 256], strides = [1, 1]} : vector<9x256xf32> to vector<1x256xf32>
    %29 = vector.broadcast %28 : vector<1x256xf32> to vector<8x256xf32>
    %30 = arith.mulf %27, %29 : vector<8x256xf32>
    %c32_i32 = arith.constant 32 : i32
    %31 = tpu.dynamic_rotate %25 by %c32_i32 dim 1 : vector<8x256xf32>, i32 -> vector<8x256xf32>
    %32 = vector.extract_strided_slice %26 {offsets = [1, 0], sizes = [1, 256], strides = [1, 1]} : vector<9x256xf32> to vector<1x256xf32>
    %33 = vector.broadcast %32 : vector<1x256xf32> to vector<8x256xf32>
    %34 = arith.mulf %31, %33 : vector<8x256xf32>
    %c30_i32 = arith.constant 30 : i32
    %35 = tpu.dynamic_rotate %25 by %c30_i32 dim 1 : vector<8x256xf32>, i32 -> vector<8x256xf32>
    %36 = vector.extract_strided_slice %26 {offsets = [2, 0], sizes = [1, 256], strides = [1, 1]} : vector<9x256xf32> to vector<1x256xf32>
    %37 = vector.broadcast %36 : vector<1x256xf32> to vector<8x256xf32>
    %38 = arith.mulf %35, %37 : vector<8x256xf32>
    %c2_i32 = arith.constant 2 : i32
    %39 = tpu.dynamic_rotate %25 by %c2_i32 dim 1 : vector<8x256xf32>, i32 -> vector<8x256xf32>
    %40 = vector.extract_strided_slice %26 {offsets = [3, 0], sizes = [1, 256], strides = [1, 1]} : vector<9x256xf32> to vector<1x256xf32>
    %41 = vector.broadcast %40 : vector<1x256xf32> to vector<8x256xf32>
    %42 = arith.mulf %39, %41 : vector<8x256xf32>
    %c254_i32 = arith.constant 254 : i32
    %43 = tpu.dynamic_rotate %25 by %c254_i32 dim 1 : vector<8x256xf32>, i32 -> vector<8x256xf32>
    %44 = vector.extract_strided_slice %26 {offsets = [5, 0], sizes = [1, 256], strides = [1, 1]} : vector<9x256xf32> to vector<1x256xf32>
    %45 = vector.broadcast %44 : vector<1x256xf32> to vector<8x256xf32>
    %46 = arith.mulf %43, %45 : vector<8x256xf32>
    %c226_i32 = arith.constant 226 : i32
    %47 = tpu.dynamic_rotate %25 by %c226_i32 dim 1 : vector<8x256xf32>, i32 -> vector<8x256xf32>
    %48 = vector.extract_strided_slice %26 {offsets = [6, 0], sizes = [1, 256], strides = [1, 1]} : vector<9x256xf32> to vector<1x256xf32>
    %49 = vector.broadcast %48 : vector<1x256xf32> to vector<8x256xf32>
    %50 = arith.mulf %47, %49 : vector<8x256xf32>
    %c224_i32 = arith.constant 224 : i32
    %51 = tpu.dynamic_rotate %25 by %c224_i32 dim 1 : vector<8x256xf32>, i32 -> vector<8x256xf32>
    %52 = vector.extract_strided_slice %26 {offsets = [7, 0], sizes = [1, 256], strides = [1, 1]} : vector<9x256xf32> to vector<1x256xf32>
    %53 = vector.broadcast %52 : vector<1x256xf32> to vector<8x256xf32>
    %54 = arith.mulf %51, %53 : vector<8x256xf32>
    %c222_i32 = arith.constant 222 : i32
    %55 = tpu.dynamic_rotate %25 by %c222_i32 dim 1 : vector<8x256xf32>, i32 -> vector<8x256xf32>
    %56 = vector.extract_strided_slice %26 {offsets = [8, 0], sizes = [1, 256], strides = [1, 1]} : vector<9x256xf32> to vector<1x256xf32>
    %57 = vector.broadcast %56 : vector<1x256xf32> to vector<8x256xf32>
    %58 = arith.mulf %55, %57 : vector<8x256xf32>
    %59 = tpu.concatenate %30, %34, %38, %42, %25, %46, %50, %54, %58 in 0 : vector<8x256xf32>, vector<8x256xf32>, vector<8x256xf32>, vector<8x256xf32>, vector<8x256xf32>, vector<8x256xf32>, vector<8x256xf32>, vector<8x256xf32>, vector<8x256xf32> -> vector<72x256xf32>
    %c0_15 = arith.constant 0 : index
    %c0_16 = arith.constant 0 : index
    %60 = vector.load %arg3[%c0_15, %c0_16] : memref<8x72xf32, #tpu.memory_space<vmem>>, vector<8x72xf32>
    %cst_17 = arith.constant dense<0.000000e+00> : vector<8x256xf32>
    %61 = tpu.matmul %60, %59, %cst_17 {dimension_numbers = #tpu.dot_dimension_numbers<[1], [0], [0], [1], [0, 0, 1, 1], [], []>} : vector<8x72xf32>, vector<72x256xf32>, vector<8x256xf32> -> vector<8x256xf32>
    %c0_18 = arith.constant 0 : index
    %c0_19 = arith.constant 0 : index
    %62 = vector.load %arg4[%c0_18, %c0_19] : memref<8x1xf32, #tpu.memory_space<vmem>>, vector<8x1xf32>
    %63 = vector.broadcast %62 : vector<8x1xf32> to vector<8x256xf32>
    %64 = arith.addf %61, %63 : vector<8x256xf32>
    %c0_20 = arith.constant 0 : index
    %c0_21 = arith.constant 0 : index
    %c0_22 = arith.constant 0 : index
    %65 = vector.load %arg2[%c0_20, %c0_21, %c0_22] : memref<1x8x256xf32, #tpu.memory_space<vmem>>, vector<1x8x256xf32>
    %66 = vector.shape_cast %65 : vector<1x8x256xf32> to vector<8x256xf32>
    %67 = arith.addf %64, %66 : vector<8x256xf32>
    %c0_23 = arith.constant 0 : index
    %c0_24 = arith.constant 0 : index
    %c0_25 = arith.constant 0 : index
    %68 = vector.load %arg9[%c0_23, %c0_24, %c0_25] : memref<1x8x256xf32, #tpu.memory_space<vmem>>, vector<1x8x256xf32>
    %69 = vector.shape_cast %68 : vector<1x8x256xf32> to vector<8x256xf32>
    %70 = vector.shape_cast %67 : vector<8x256xf32> to vector<1x8x256xf32>
    tpu.vector_store %arg9[%c0_23, %c0_24, %c0_25], %70 {strides = array<i32>} : memref<1x8x256xf32, #tpu.memory_space<vmem>>, vector<1x8x256xf32>,
    return
  }
  func.func @transform_0(%arg0: i32) -> (i32, i32, i32) {
    %c0_i32 = arith.constant 0 : i32
    %c0_i32_0 = arith.constant 0 : i32
    %c0_i32_1 = arith.constant 0 : i32
    return %arg0, %c0_i32, %c0_i32_0 : i32, i32, i32
  }
  func.func @transform_1(%arg0: i32) -> (i32, i32, i32) {
    %c0_i32 = arith.constant 0 : i32
    %c0_i32_0 = arith.constant 0 : i32
    %c0_i32_1 = arith.constant 0 : i32
    return %arg0, %c0_i32, %c0_i32_0 : i32, i32, i32
  }
  func.func @transform_2(%arg0: i32) -> (i32, i32) {
    %c0_i32 = arith.constant 0 : i32
    %c0_i32_0 = arith.constant 0 : i32
    %c0_i32_1 = arith.constant 0 : i32
    return %c0_i32, %c0_i32_0 : i32, i32
  }
  func.func @transform_3(%arg0: i32) -> (i32, i32) {
    %c0_i32 = arith.constant 0 : i32
    %c0_i32_0 = arith.constant 0 : i32
    %c0_i32_1 = arith.constant 0 : i32
    return %c0_i32, %c0_i32_0 : i32, i32
  }
  func.func @transform_4(%arg0: i32) -> (i32, i32) {
    %c0_i32 = arith.constant 0 : i32
    %c0_i32_0 = arith.constant 0 : i32
    %c0_i32_1 = arith.constant 0 : i32
    return %c0_i32, %c0_i32_0 : i32, i32
  }
  func.func @transform_5(%arg0: i32) -> (i32, i32) {
    %c0_i32 = arith.constant 0 : i32
    %c0_i32_0 = arith.constant 0 : i32
    %c0_i32_1 = arith.constant 0 : i32
    return %c0_i32, %c0_i32_0 : i32, i32
  }
  func.func @transform_6(%arg0: i32) -> (i32, i32, i32) {
    %c0_i32 = arith.constant 0 : i32
    %c0_i32_0 = arith.constant 0 : i32
    %c0_i32_1 = arith.constant 0 : i32
    %c0_i32_2 = arith.constant 0 : i32
    return %c0_i32, %c0_i32_0, %c0_i32_1 : i32, i32, i32
  }
  func.func @transform_7(%arg0: i32) -> (i32, i32) {
    %c0_i32 = arith.constant 0 : i32
    %c0_i32_0 = arith.constant 0 : i32
    %c0_i32_1 = arith.constant 0 : i32
    return %c0_i32, %c0_i32_0 : i32, i32
  }
  func.func @transform_8(%arg0: i32) -> (i32, i32, i32) {
    %c0_i32 = arith.constant 0 : i32
    %c0_i32_0 = arith.constant 0 : i32
    %c0_i32_1 = arith.constant 0 : i32
    return %arg0, %c0_i32, %c0_i32_0 : i32, i32, i32
  }
}

</mosaic_0001>

<llo_original>
// kernel: resnet_block_bn.2
$region0: #{resnet_block_bn.2}
  #allocation0 [shape = 'u32[]', space=smem, size = 0x4, offset = 0x4, fixed_abs, tag = 'smem constant byte address 0x4 - core index']
  #allocation1 [shape = 'u32[72,128]{1,0:T(1,128)}', space=vmem, size = 0x9000, scoped, tag = 'internal scratch']
  %s0 = inlined_call_operand.vmem [shape: f32[2,8,256], index: 0, kind: input, shape index: {}]
  %s1 = inlined_call_operand.vmem [shape: f32[8,72], index: 1, kind: input, shape index: {}]
  %s2 = inlined_call_operand.vmem [shape: f32[9,256], index: 2, kind: input, shape index: {}]
  %s3 = inlined_call_operand.vmem [shape: f32[2,8,256], index: 3, kind: output, shape index: {0}]
  %s4 = inlined_call_operand.vmem [shape: f32[2,8,128], index: 4, kind: output, shape index: {1}]
  %5 = xla_tuple %s3, %s4
  %s6 = sld [smem:[#allocation0]]
  $region53: #{resnet_block_bn.2} parent=0
    _
  %s8 = ssub.s32 1, %s6
  %s9 = scalar_select 0, %s8, %s6
  loop: start=0, step=1, limit=4
  $region2: #{resnet_block_bn.2} parent=0 // loop_pre_header
    _
  $region3: #{resnet_block_bn.2} parent=0 // loop_header
    %s11 = sphi 0, %s15
    %p12 = scmp.ge.s32.totalorder %s11, 4
    %s21 = sphi 0, %s23
    %s24 = sphi 0, %s21
    %s25 = sphi 0, %s24
    %s41 = sphi 0, %s25
    %s45 = sphi 0, %s45
    %s47 = sphi 0, %s45
    %s48 = sphi 0, %s47
    %s62 = sphi 0, %s48
    %s66 = sphi 0, %s66
    %s68 = sphi 0, %s66
    %s69 = sphi 0, %s68
    %s83 = sphi 0, %s69
    %s89 = sphi 0, %s91
    %s92 = sphi 0, %s89
    %s93 = sphi 0, %s92
    %s109 = sphi 0, %s93
    %s115 = sphi 0, %s117
    %s118 = sphi 0, %s115
    %s119 = sphi 0, %s118
    %s135 = sphi 0, %s119
  $region4: #{resnet_block_bn.2} parent=0 // loop_header_branch
    %14 = sbr.rel (%p12) target = $region8
  $region5: #{resnet_block_bn.2} parent=0 // loop_body
    %s16 = ssub.s32 %s11, 1
    %s17 = ssub.s32 %s11, 2
    %s18 = sadd.s32 %s11, 1
    %s19 = ssub.s32 %s11, %s18
    %p20 = scmp.eq.s32.totalorder %s19, 0
    %s22 = sadd.s32 %s21, 1
    %s23 = scalar_select %p20, %s21, %s22
    %p26 = pneg %p20
    %p27 = scmp.eq.s32.totalorder %s11, 1
    %p28 = por %p26, %p27
    %p29 = scmp.ne.s32.totalorder %s21, %s24
    %p30 = scmp.eq.s32.totalorder %s11, 0
    %p31 = por %p29, %p30
    %p32 = scmp.ne.s32.totalorder %s21, %s24
    %p33 = scmp.eq.s32.totalorder %s16, 1
    %p34 = por %p32, %p33
    %p35 = scmp.ne.s32.totalorder %s24, %s25
    %p36 = scmp.eq.s32.totalorder %s16, 0
    %p37 = por %p35, %p36
    %p38 = scmp.ne.s32.totalorder %s24, %s25
    %p39 = scmp.eq.s32.totalorder %s17, 1
    %p40 = por %p38, %p39
    %p42 = scmp.ne.s32.totalorder %s25, %s41
    %p43 = scmp.eq.s32.totalorder %s17, 0
    %p44 = por %p42, %p43
    %s46 = sadd.s32 %s45, 1
    %p49 = scmp.eq.s32.totalorder %s11, 1
    %p50 = scmp.ne.s32.totalorder %s45, %s47
    %p51 = scmp.eq.s32.totalorder %s11, 0
    %p52 = por %p50, %p51
    %p53 = scmp.ne.s32.totalorder %s45, %s47
    %p54 = scmp.eq.s32.totalorder %s16, 1
    %p55 = por %p53, %p54
    %p56 = scmp.ne.s32.totalorder %s47, %s48
    %p57 = scmp.eq.s32.totalorder %s16, 0
    %p58 = por %p56, %p57
    %p59 = scmp.ne.s32.totalorder %s47, %s48
    %p60 = scmp.eq.s32.totalorder %s17, 1
    %p61 = por %p59, %p60
    %p63 = scmp.ne.s32.totalorder %s48, %s62
    %p64 = scmp.eq.s32.totalorder %s17, 0
    %p65 = por %p63, %p64
    %s67 = sadd.s32 %s66, 1
    %p70 = scmp.eq.s32.totalorder %s11, 1
    %p71 = scmp.ne.s32.totalorder %s66, %s68
    %p72 = scmp.eq.s32.totalorder %s11, 0
    %p73 = por %p71, %p72
    %p74 = scmp.ne.s32.totalorder %s66, %s68
    %p75 = scmp.eq.s32.totalorder %s16, 1
    %p76 = por %p74, %p75
    %p77 = scmp.ne.s32.totalorder %s68, %s69
    %p78 = scmp.eq.s32.totalorder %s16, 0
    %p79 = por %p77, %p78
    %p80 = scmp.ne.s32.totalorder %s68, %s69
    %p81 = scmp.eq.s32.totalorder %s17, 1
    %p82 = por %p80, %p81
    %p84 = scmp.ne.s32.totalorder %s69, %s83
    %p85 = scmp.eq.s32.totalorder %s17, 0
    %p86 = por %p84, %p85
    %s87 = ssub.s32 %s11, %s18
    %p88 = scmp.eq.s32.totalorder %s87, 0
    %s90 = sadd.s32 %s89, 1
    %s91 = scalar_select %p88, %s89, %s90
    %p94 = pneg %p88
    %p95 = scmp.eq.s32.totalorder %s11, 1
    %p96 = por %p94, %p95
    %p97 = scmp.ne.s32.totalorder %s89, %s92
    %p98 = scmp.eq.s32.totalorder %s11, 0
    %p99 = por %p97, %p98
    %p100 = scmp.ne.s32.totalorder %s89, %s92
    %p101 = scmp.eq.s32.totalorder %s16, 1
    %p102 = por %p100, %p101
    %p103 = scmp.ne.s32.totalorder %s92, %s93
    %p104 = scmp.eq.s32.totalorder %s16, 0
    %p105 = por %p103, %p104
    %p106 = scmp.ne.s32.totalorder %s92, %s93
    %p107 = scmp.eq.s32.totalorder %s17, 1
    %p108 = por %p106, %p107
    %p110 = scmp.ne.s32.totalorder %s93, %s109
    %p111 = scmp.eq.s32.totalorder %s17, 0
    %p112 = por %p110, %p111
    %s113 = ssub.s32 %s11, %s18
    %p114 = scmp.eq.s32.totalorder %s113, 0
    %s116 = sadd.s32 %s115, 1
    %s117 = scalar_select %p114, %s115, %s116
    %p120 = pneg %p114
    %p121 = scmp.eq.s32.totalorder %s11, 1
    %p122 = por %p120, %p121
    %p123 = scmp.ne.s32.totalorder %s115, %s118
    %p124 = scmp.eq.s32.totalorder %s11, 0
    %p125 = por %p123, %p124
    %p126 = scmp.ne.s32.totalorder %s115, %s118
    %p127 = scmp.eq.s32.totalorder %s16, 1
    %p128 = por %p126, %p127
    %p129 = scmp.ne.s32.totalorder %s118, %s119
    %p130 = scmp.eq.s32.totalorder %s16, 0
    %p131 = por %p129, %p130
    %p132 = scmp.ne.s32.totalorder %s118, %s119
    %p133 = scmp.eq.s32.totalorder %s17, 1
    %p134 = por %p132, %p133
    %p136 = scmp.ne.s32.totalorder %s119, %s135
    %p137 = scmp.eq.s32.totalorder %s17, 0
    %p138 = por %p136, %p137
    %p139 = scmp.le.s32.totalorder 1, %s11
    %p140 = scmp.lt.s32.totalorder %s11, 3
    %p141 = pnand %p139, %p140
    %p142 = pneg %p141
    // Predicated region
    $region9: #{resnet_block_bn.2} parent=5 // pred_check
      _
    $region10: #{resnet_block_bn.2} parent=5 // pred_check_branch
      %144 = sbr.rel (%p141) target = $region12
    $region11: #{resnet_block_bn.2} parent=5 // pred_region
      %s145 = ssub.s32 %s11, 1
      // Predicated region
      $region13: #{resnet_block_bn.2} parent=11 // pred_check
        %p146 = pneg %p58
      $region14: #{resnet_block_bn.2} parent=11 // pred_check_branch
        %148 = sbr.rel (%p146) target = $region16
      $region15: #{resnet_block_bn.2} parent=11 // pred_region
        _
      $region16: #{resnet_block_bn.2} parent=11 // pred_fallthru
        _
      // Predicated region
      $region17: #{resnet_block_bn.2} parent=11 // pred_check
        %p149 = pneg %p79
      $region18: #{resnet_block_bn.2} parent=11 // pred_check_branch
        %151 = sbr.rel (%p149) target = $region20
      $region19: #{resnet_block_bn.2} parent=11 // pred_region
        _
      $region20: #{resnet_block_bn.2} parent=11 // pred_fallthru
        _
    $region12: #{resnet_block_bn.2} parent=5 // pred_fallthru
      _
    %p152 = scmp.lt.s32.totalorder %s11, 2
    // Predicated region
    $region21: #{resnet_block_bn.2} parent=5 // pred_check
      %p153 = pneg %p152
    $region22: #{resnet_block_bn.2} parent=5 // pred_check_branch
      %155 = sbr.rel (%p153) target = $region24
    $region23: #{resnet_block_bn.2} parent=5 // pred_region
      // Predicated region
      $region25: #{resnet_block_bn.2} parent=23 // pred_check
        %p156 = pneg %p31
      $region26: #{resnet_block_bn.2} parent=23 // pred_check_branch
        %158 = sbr.rel (%p156) target = $region28
      $region27: #{resnet_block_bn.2} parent=23 // pred_region
        %p159 = scmp.lt.s32.totalorder %s11, 1
        %s160 = scalar_select %p159, %s11, 1
        %s161 = smul.addr %s160, 2
        %s162 = smul.addr %s161, 8
        %s163 = scalar_lea.vmem %s0, %s162
      $region28: #{resnet_block_bn.2} parent=23 // pred_fallthru
        _
    $region24: #{resnet_block_bn.2} parent=5 // pred_fallthru
      _
    %p164 = scmp.le.s32.totalorder 1, %s11
    %p165 = scmp.lt.s32.totalorder %s11, 3
    %p166 = pnand %p164, %p165
    %p167 = pneg %p166
    // Predicated region
    $region29: #{resnet_block_bn.2} parent=5 // pred_check
      _
    $region30: #{resnet_block_bn.2} parent=5 // pred_check_branch
      %169 = sbr.rel (%p166) target = $region32
    $region31: #{resnet_block_bn.2} parent=5 // pred_region
      %s170 = ssub.s32 %s11, 1
      %p171 = scmp.lt.s32.totalorder %s16, 1
      %s172 = scalar_select %p171, %s16, 1
      %s173 = smul.addr %s172, 2
      %s174 = smul.addr %s173, 8
      %s175 = scalar_lea.vmem %s0, %s174
      %p176 = pneg %p37
      %p177 = pneg %p34
      %p178 = pneg %p58
      %p179 = pneg %p55
      %p180 = pneg %p79
      %p181 = pneg %p76
      %p182 = pneg %p105
      %p183 = pneg %p102
      %p184 = scmp.lt.s32.totalorder %s16, 1
      %s185 = scalar_select %p184, %s16, 1
      %s186 = smul.addr %s185, 2
      %s187 = smul.addr %s186, 8
      %s188 = scalar_lea.vmem %s3, %s187
      %p189 = pneg %p131
      %p190 = pneg %p128
      %p191 = scmp.lt.s32.totalorder %s16, 1
      %s192 = scalar_select %p191, %s16, 1
      %s193 = smul.addr %s192, 8
      %s194 = scalar_lea.vmem %s4, %s193
      %p195 = scmp.lt.s32.totalorder %s16, 1
      %s196 = scalar_select %p195, %s16, 1
      %s197 = smul.addr %s196, 2
      %s198 = smul.addr %s197, 8
      %s199 = scalar_lea.vmem %s0, %s198
      %p200 = scmp.lt.s32.totalorder %s16, 1
      %s201 = scalar_select %p200, %s16, 1
      %s202 = smul.addr %s201, 2
      %s203 = smul.addr %s202, 8
      %s204 = scalar_lea.vmem %s3, %s203
      %p205 = scmp.lt.s32.totalorder %s16, 1
      %s206 = scalar_select %p205, %s16, 1
      %s207 = smul.addr %s206, 8
      %s208 = scalar_lea.vmem %s4, %s207
      %v209 = vld [vmem:[%s199] sm:$0xff]
      %v210 = vld [vmem:[%s199 + $0x8] sm:$0xff]
      %v211 = vld [vmem:[%s2] sm:$0xff]
      %v212 = vld [vmem:[%s2 + $0x8] sm:$0xff]
      %v213 = vld [vmem:[%s2 + $0x10] sm:$0x1]
      %v214 = vld [vmem:[%s2 + $0x18] sm:$0x1]
      %215 = vrot.lane.b32.xlu0 %v209, 17
      %v216 = vpop.permute.xlu0 %215
      %217 = vrot.lane.b32.xlu0 %v210, 17
      %v218 = vpop.permute.xlu0 %217
      %v219 = vlaneseq
      %v220 = vand.u32 %v219, 127
      %vm221 = vcmp.lt.s32.totalorder %v220, 17
      %v222 = vsel %vm221, %v216, %v218
      %v223 = vsel %vm221, %v218, %v216
      %v224 = vperm.slane %v211, 0
      %v225 = vperm.slane %v212, 0
      %v226 = vmul.f32 %v223, %v224
      %v227 = vmul.f32 %v222, %v225
      %228 = vrot.lane.b32.xlu0 %v209, 16
      %v229 = vpop.permute.xlu0 %228
      %230 = vrot.lane.b32.xlu0 %v210, 16
      %v231 = vpop.permute.xlu0 %230
      %vm232 = vcmp.lt.s32.totalorder %v220, 16
      %v233 = vsel %vm232, %v229, %v231
      %v234 = vsel %vm232, %v231, %v229
      %v235 = vperm.slane %v211, 1
      %v236 = vperm.slane %v212, 1
      %v237 = vmul.f32 %v234, %v235
      %v238 = vmul.f32 %v233, %v236
      %239 = vrot.lane.b32.xlu0 %v209, 15
      %v240 = vpop.permute.xlu0 %239
      %241 = vrot.lane.b32.xlu0 %v210, 15
      %v242 = vpop.permute.xlu0 %241
      %vm243 = vcmp.lt.s32.totalorder %v220, 15
      %v244 = vsel %vm243, %v240, %v242
      %v245 = vsel %vm243, %v242, %v240
      %v246 = vperm.slane %v211, 2
      %v247 = vperm.slane %v212, 2
      %v248 = vmul.f32 %v245, %v246
      %v249 = vmul.f32 %v244, %v247
      %250 = vrot.lane.b32.xlu0 %v209, 1
      %v251 = vpop.permute.xlu0 %250
      %252 = vrot.lane.b32.xlu0 %v210, 1
      %v253 = vpop.permute.xlu0 %252
      %vm254 = vcmp.lt.s32.totalorder %v220, 1
      %v255 = vsel %vm254, %v251, %v253
      %v256 = vsel %vm254, %v253, %v251
      %v257 = vperm.slane %v211, 3
      %v258 = vperm.slane %v212, 3
      %v259 = vmul.f32 %v256, %v257
      %v260 = vmul.f32 %v255, %v258
      %261 = vrot.lane.b32.xlu0 %v209, 127
      %v262 = vpop.permute.xlu0 %261
      %263 = vrot.lane.b32.xlu0 %v210, 127
      %v264 = vpop.permute.xlu0 %263
      %vm265 = vcmp.lt.s32.totalorder %v220, 127
      %v266 = vsel %vm265, %v262, %v264
      %v267 = vsel %vm265, %v264, %v262
      %v268 = vperm.slane %v211, 5
      %v269 = vperm.slane %v212, 5
      %v270 = vmul.f32 %v266, %v268
      %v271 = vmul.f32 %v267, %v269
      %272 = vrot.lane.b32.xlu0 %v209, 113
      %v273 = vpop.permute.xlu0 %272
      %274 = vrot.lane.b32.xlu0 %v210, 113
      %v275 = vpop.permute.xlu0 %274
      %vm276 = vcmp.lt.s32.totalorder %v220, 113
      %v277 = vsel %vm276, %v273, %v275
      %v278 = vsel %vm276, %v275, %v273
      %v279 = vperm.slane %v211, 6
      %v280 = vperm.slane %v212, 6
      %v281 = vmul.f32 %v277, %v279
      %v282 = vmul.f32 %v278, %v280
      %283 = vrot.lane.b32.xlu0 %v209, 112
      %v284 = vpop.permute.xlu0 %283
      %285 = vrot.lane.b32.xlu0 %v210, 112
      %v286 = vpop.permute.xlu0 %285
      %vm287 = vcmp.lt.s32.totalorder %v220, 112
      %v288 = vsel %vm287, %v284, %v286
      %v289 = vsel %vm287, %v286, %v284
      %v290 = vperm.slane %v211, 7
      %v291 = vperm.slane %v212, 7
      %v292 = vmul.f32 %v288, %v290
      %v293 = vmul.f32 %v289, %v291
      %294 = vrot.lane.b32.xlu0 %v209, 111
      %v295 = vpop.permute.xlu0 %294
      %296 = vrot.lane.b32.xlu0 %v210, 111
      %v297 = vpop.permute.xlu0 %296
      %vm298 = vcmp.lt.s32.totalorder %v220, 111
      %v299 = vsel %vm298, %v295, %v297
      %v300 = vsel %vm298, %v297, %v295
      %v301 = vperm.slane %v213, 0
      %v302 = vperm.slane %v214, 0
      %v303 = vmul.f32 %v299, %v301
      %v304 = vmul.f32 %v300, %v302
      %v305 = vld [vmem:[%s1] sm:$0xff]
      %vm306 = vcmask 588800
      %v308 = vsel %vm306, %v305, 0
      %310 = vmatpush.msra.mxu0 0.0
      %311 = vmatpush.msra.mxu0 0.0
      %312 = vmatpush.msra.mxu0 0.0
      %313 = vmatpush.msra.mxu0 0.0
      %314 = vmatpush.msra.mxu0 0.0
      %315 = vmatpush.msra.mxu0 0.0
      %316 = vmatpush.msra.mxu0 0.0
      %317 = vmatpush.msra.mxu0 %v303
      %318 = vmatpush.msra.mxu0 %v292
      %319 = vmatpush.msra.mxu0 %v281
      %320 = vmatpush.msra.mxu0 %v270
      %321 = vmatpush.msra.mxu0 %v209
      %322 = vmatpush.msra.mxu0 %v259
      %323 = vmatpush.msra.mxu0 %v248
      %324 = vmatpush.msra.mxu0 %v237
      %325 = vmatpush.msra.mxu0 %v226
      %326 = vmatmul.f32.gmra.mxu0 %v308
      %v327 = vpop.f32.mrf.mxu0
      %v328 = vadd.f32 0.0, %v327
      %329 = vdwg.mxu0
      %330 = vmatpush.msra.mxu0 0.0
      %331 = vmatpush.msra.mxu0 0.0
      %332 = vmatpush.msra.mxu0 0.0
      %333 = vmatpush.msra.mxu0 0.0
      %334 = vmatpush.msra.mxu0 0.0
      %335 = vmatpush.msra.mxu0 0.0
      %336 = vmatpush.msra.mxu0 0.0
      %337 = vmatpush.msra.mxu0 %v304
      %338 = vmatpush.msra.mxu0 %v293
      %339 = vmatpush.msra.mxu0 %v282
      %340 = vmatpush.msra.mxu0 %v271
      %341 = vmatpush.msra.mxu0 %v210
      %342 = vmatpush.msra.mxu0 %v260
      %343 = vmatpush.msra.mxu0 %v249
      %344 = vmatpush.msra.mxu0 %v238
      %345 = vmatpush.msra.mxu0 %v227
      %346 = vmatmul.f32.gmra.mxu0 %v308
      %v347 = vpop.f32.mrf.mxu0
      %v348 = vadd.f32 0.0, %v347
      %349 = vdwg.mxu0
      %350 = vst [vmem:[%s204] sm:$0xff] %v328
      %351 = vst [vmem:[%s204 + $0x8] sm:$0xff] %v348
      %v352 = vadd.f32 %v328, %v348
      %353 = vadd.xlane.f32.xlu0 %v352
      %v354 = vpop.xlane.xlu0 %353
      %v355 = vmul.f32 %v328, %v328
      %v356 = vmul.f32 %v348, %v348
      %v357 = vadd.f32 %v355, %v356
      %358 = vadd.xlane.f32.xlu0 %v357
      %v359 = vpop.xlane.xlu0 %358
      %vm360 = vcmask 7168
      %v361 = vsel %vm360, %v354, %v359
      %vm362 = vcmask 15360
      %v363 = vsel %vm362, %v361, 0.0
      %364 = vst [vmem:[%s208] sm:$0xff] %v363
      %p365 = scmp.lt.s32.totalorder %s16, 1
      %s366 = scalar_select %p365, %s16, 1
      %s367 = smul.addr %s366, 2
      %s368 = smul.addr %s367, 8
      %s369 = scalar_lea.vmem %s3, %s368
      %p370 = scmp.lt.s32.totalorder %s16, 1
      %s371 = scalar_select %p370, %s16, 1
      %s372 = smul.addr %s371, 8
      %s373 = scalar_lea.vmem %s4, %s372
      // Predicated region
      $region33: #{resnet_block_bn.2} parent=31 // pred_check
        %p374 = pneg %p102
      $region34: #{resnet_block_bn.2} parent=31 // pred_check_branch
        %376 = sbr.rel (%p374) target = $region36
      $region35: #{resnet_block_bn.2} parent=31 // pred_region
        _
      $region36: #{resnet_block_bn.2} parent=31 // pred_fallthru
        _
      // Predicated region
      $region37: #{resnet_block_bn.2} parent=31 // pred_check
        %p377 = pneg %p128
      $region38: #{resnet_block_bn.2} parent=31 // pred_check_branch
        %379 = sbr.rel (%p377) target = $region40
      $region39: #{resnet_block_bn.2} parent=31 // pred_region
        _
      $region40: #{resnet_block_bn.2} parent=31 // pred_fallthru
        _
    $region32: #{resnet_block_bn.2} parent=5 // pred_fallthru
      _
    %p380 = scmp.le.s32.totalorder 2, %s11
    // Predicated region
    $region41: #{resnet_block_bn.2} parent=5 // pred_check
      %p381 = pneg %p380
    $region42: #{resnet_block_bn.2} parent=5 // pred_check_branch
      %383 = sbr.rel (%p381) target = $region44
    $region43: #{resnet_block_bn.2} parent=5 // pred_region
      %s384 = ssub.s32 %s11, 2
      // Predicated region
      $region45: #{resnet_block_bn.2} parent=43 // pred_check
        %p385 = pneg %p108
      $region46: #{resnet_block_bn.2} parent=43 // pred_check_branch
        %387 = sbr.rel (%p385) target = $region48
      $region47: #{resnet_block_bn.2} parent=43 // pred_region
        %p388 = scmp.lt.s32.totalorder %s17, 1
        %s389 = scalar_select %p388, %s17, 1
        %s390 = smul.addr %s389, 2
        %s391 = smul.addr %s390, 8
        %s392 = scalar_lea.vmem %s3, %s391
      $region48: #{resnet_block_bn.2} parent=43 // pred_fallthru
        _
      // Predicated region
      $region49: #{resnet_block_bn.2} parent=43 // pred_check
        %p393 = pneg %p134
      $region50: #{resnet_block_bn.2} parent=43 // pred_check_branch
        %395 = sbr.rel (%p393) target = $region52
      $region51: #{resnet_block_bn.2} parent=43 // pred_region
        %p396 = scmp.lt.s32.totalorder %s17, 1
        %s397 = scalar_select %p396, %s17, 1
        %s398 = smul.addr %s397, 8
        %s399 = scalar_lea.vmem %s4, %s398
      $region52: #{resnet_block_bn.2} parent=43 // pred_fallthru
        _
    $region44: #{resnet_block_bn.2} parent=5 // pred_fallthru
      _
  $region6: #{resnet_block_bn.2} parent=0 // loop_footer
    %s15 = sadd.s32 1, %s11
  $region7: #{resnet_block_bn.2} parent=0 // loop_footer_branch
    %10 = sbr.rel target = $region3
  $region8: #{resnet_block_bn.2} parent=0 // loop_exit
    _

// kernel: resnet_block_bn.3
$region0: #{resnet_block_bn.3}
  #allocation0 [shape = 'u32[]', space=smem, size = 0x4, offset = 0x4, fixed_abs, tag = 'smem constant byte address 0x4 - core index']
  #allocation1 [shape = 'u32[72,128]{1,0:T(1,128)}', space=vmem, size = 0x9000, scoped, tag = 'internal scratch']
  %s0 = inlined_call_operand.vmem [shape: f32[2,8,256], index: 0, kind: input, shape index: {}, may-alias: {0,8}]
  %s1 = inlined_call_operand.vmem [shape: f32[2,8,256], index: 1, kind: input, shape index: {}]
  %s2 = inlined_call_operand.vmem [shape: f32[8,72], index: 2, kind: input, shape index: {}]
  %s3 = inlined_call_operand.vmem [shape: f32[8,1], index: 3, kind: input, shape index: {}]
  %s4 = inlined_call_operand.vmem [shape: f32[8,1], index: 4, kind: input, shape index: {}]
  %s5 = inlined_call_operand.vmem [shape: f32[8,1], index: 5, kind: input, shape index: {}]
  %s6 = inlined_call_operand.vmem [shape: f32[2,8,128], index: 6, kind: input, shape index: {}]
  %s7 = inlined_call_operand.vmem [shape: f32[9,256], index: 7, kind: input, shape index: {}]
  %s8 = inlined_call_operand.vmem [shape: f32[2,8,256], index: 8, kind: output, shape index: {}, may-alias: {0,8}]
  %s9 = sld [smem:[#allocation0]]
  $region65: #{resnet_block_bn.3} parent=0
    _
  %s11 = ssub.s32 1, %s9
  %s12 = scalar_select 0, %s11, %s9
  loop: start=0, step=1, limit=4
  $region2: #{resnet_block_bn.3} parent=0 // loop_pre_header
    _
  $region3: #{resnet_block_bn.3} parent=0 // loop_header
    %s14 = sphi 0, %s18
    %p15 = scmp.ge.s32.totalorder %s14, 4
    %s24 = sphi 0, %s26
    %s27 = sphi 0, %s24
    %s28 = sphi 0, %s27
    %s44 = sphi 0, %s28
    %s50 = sphi 0, %s52
    %s53 = sphi 0, %s50
    %s54 = sphi 0, %s53
    %s70 = sphi 0, %s54
    %s74 = sphi 0, %s74
    %s76 = sphi 0, %s74
    %s77 = sphi 0, %s76
    %s91 = sphi 0, %s77
    %s95 = sphi 0, %s95
    %s97 = sphi 0, %s95
    %s98 = sphi 0, %s97
    %s112 = sphi 0, %s98
    %s116 = sphi 0, %s116
    %s118 = sphi 0, %s116
    %s119 = sphi 0, %s118
    %s133 = sphi 0, %s119
    %s137 = sphi 0, %s137
    %s139 = sphi 0, %s137
    %s140 = sphi 0, %s139
    %s154 = sphi 0, %s140
    %s158 = sphi 0, %s158
    %s160 = sphi 0, %s158
    %s161 = sphi 0, %s160
    %s175 = sphi 0, %s161
    %s179 = sphi 0, %s179
    %s181 = sphi 0, %s179
    %s182 = sphi 0, %s181
    %s196 = sphi 0, %s182
    %s202 = sphi 0, %s204
    %s205 = sphi 0, %s202
    %s206 = sphi 0, %s205
    %s222 = sphi 0, %s206
  $region4: #{resnet_block_bn.3} parent=0 // loop_header_branch
    %17 = sbr.rel (%p15) target = $region8
  $region5: #{resnet_block_bn.3} parent=0 // loop_body
    %s19 = ssub.s32 %s14, 1
    %s20 = ssub.s32 %s14, 2
    %s21 = sadd.s32 %s14, 1
    %s22 = ssub.s32 %s14, %s21
    %p23 = scmp.eq.s32.totalorder %s22, 0
    %s25 = sadd.s32 %s24, 1
    %s26 = scalar_select %p23, %s24, %s25
    %p29 = pneg %p23
    %p30 = scmp.eq.s32.totalorder %s14, 1
    %p31 = por %p29, %p30
    %p32 = scmp.ne.s32.totalorder %s24, %s27
    %p33 = scmp.eq.s32.totalorder %s14, 0
    %p34 = por %p32, %p33
    %p35 = scmp.ne.s32.totalorder %s24, %s27
    %p36 = scmp.eq.s32.totalorder %s19, 1
    %p37 = por %p35, %p36
    %p38 = scmp.ne.s32.totalorder %s27, %s28
    %p39 = scmp.eq.s32.totalorder %s19, 0
    %p40 = por %p38, %p39
    %p41 = scmp.ne.s32.totalorder %s27, %s28
    %p42 = scmp.eq.s32.totalorder %s20, 1
    %p43 = por %p41, %p42
    %p45 = scmp.ne.s32.totalorder %s28, %s44
    %p46 = scmp.eq.s32.totalorder %s20, 0
    %p47 = por %p45, %p46
    %s48 = ssub.s32 %s14, %s21
    %p49 = scmp.eq.s32.totalorder %s48, 0
    %s51 = sadd.s32 %s50, 1
    %s52 = scalar_select %p49, %s50, %s51
    %p55 = pneg %p49
    %p56 = scmp.eq.s32.totalorder %s14, 1
    %p57 = por %p55, %p56
    %p58 = scmp.ne.s32.totalorder %s50, %s53
    %p59 = scmp.eq.s32.totalorder %s14, 0
    %p60 = por %p58, %p59
    %p61 = scmp.ne.s32.totalorder %s50, %s53
    %p62 = scmp.eq.s32.totalorder %s19, 1
    %p63 = por %p61, %p62
    %p64 = scmp.ne.s32.totalorder %s53, %s54
    %p65 = scmp.eq.s32.totalorder %s19, 0
    %p66 = por %p64, %p65
    %p67 = scmp.ne.s32.totalorder %s53, %s54
    %p68 = scmp.eq.s32.totalorder %s20, 1
    %p69 = por %p67, %p68
    %p71 = scmp.ne.s32.totalorder %s54, %s70
    %p72 = scmp.eq.s32.totalorder %s20, 0
    %p73 = por %p71, %p72
    %s75 = sadd.s32 %s74, 1
    %p78 = scmp.eq.s32.totalorder %s14, 1
    %p79 = scmp.ne.s32.totalorder %s74, %s76
    %p80 = scmp.eq.s32.totalorder %s14, 0
    %p81 = por %p79, %p80
    %p82 = scmp.ne.s32.totalorder %s74, %s76
    %p83 = scmp.eq.s32.totalorder %s19, 1
    %p84 = por %p82, %p83
    %p85 = scmp.ne.s32.totalorder %s76, %s77
    %p86 = scmp.eq.s32.totalorder %s19, 0
    %p87 = por %p85, %p86
    %p88 = scmp.ne.s32.totalorder %s76, %s77
    %p89 = scmp.eq.s32.totalorder %s20, 1
    %p90 = por %p88, %p89
    %p92 = scmp.ne.s32.totalorder %s77, %s91
    %p93 = scmp.eq.s32.totalorder %s20, 0
    %p94 = por %p92, %p93
    %s96 = sadd.s32 %s95, 1
    %p99 = scmp.eq.s32.totalorder %s14, 1
    %p100 = scmp.ne.s32.totalorder %s95, %s97
    %p101 = scmp.eq.s32.totalorder %s14, 0
    %p102 = por %p100, %p101
    %p103 = scmp.ne.s32.totalorder %s95, %s97
    %p104 = scmp.eq.s32.totalorder %s19, 1
    %p105 = por %p103, %p104
    %p106 = scmp.ne.s32.totalorder %s97, %s98
    %p107 = scmp.eq.s32.totalorder %s19, 0
    %p108 = por %p106, %p107
    %p109 = scmp.ne.s32.totalorder %s97, %s98
    %p110 = scmp.eq.s32.totalorder %s20, 1
    %p111 = por %p109, %p110
    %p113 = scmp.ne.s32.totalorder %s98, %s112
    %p114 = scmp.eq.s32.totalorder %s20, 0
    %p115 = por %p113, %p114
    %s117 = sadd.s32 %s116, 1
    %p120 = scmp.eq.s32.totalorder %s14, 1
    %p121 = scmp.ne.s32.totalorder %s116, %s118
    %p122 = scmp.eq.s32.totalorder %s14, 0
    %p123 = por %p121, %p122
    %p124 = scmp.ne.s32.totalorder %s116, %s118
    %p125 = scmp.eq.s32.totalorder %s19, 1
    %p126 = por %p124, %p125
    %p127 = scmp.ne.s32.totalorder %s118, %s119
    %p128 = scmp.eq.s32.totalorder %s19, 0
    %p129 = por %p127, %p128
    %p130 = scmp.ne.s32.totalorder %s118, %s119
    %p131 = scmp.eq.s32.totalorder %s20, 1
    %p132 = por %p130, %p131
    %p134 = scmp.ne.s32.totalorder %s119, %s133
    %p135 = scmp.eq.s32.totalorder %s20, 0
    %p136 = por %p134, %p135
    %s138 = sadd.s32 %s137, 1
    %p141 = scmp.eq.s32.totalorder %s14, 1
    %p142 = scmp.ne.s32.totalorder %s137, %s139
    %p143 = scmp.eq.s32.totalorder %s14, 0
    %p144 = por %p142, %p143
    %p145 = scmp.ne.s32.totalorder %s137, %s139
    %p146 = scmp.eq.s32.totalorder %s19, 1
    %p147 = por %p145, %p146
    %p148 = scmp.ne.s32.totalorder %s139, %s140
    %p149 = scmp.eq.s32.totalorder %s19, 0
    %p150 = por %p148, %p149
    %p151 = scmp.ne.s32.totalorder %s139, %s140
    %p152 = scmp.eq.s32.totalorder %s20, 1
    %p153 = por %p151, %p152
    %p155 = scmp.ne.s32.totalorder %s140, %s154
    %p156 = scmp.eq.s32.totalorder %s20, 0
    %p157 = por %p155, %p156
    %s159 = sadd.s32 %s158, 1
    %p162 = scmp.eq.s32.totalorder %s14, 1
    %p163 = scmp.ne.s32.totalorder %s158, %s160
    %p164 = scmp.eq.s32.totalorder %s14, 0
    %p165 = por %p163, %p164
    %p166 = scmp.ne.s32.totalorder %s158, %s160
    %p167 = scmp.eq.s32.totalorder %s19, 1
    %p168 = por %p166, %p167
    %p169 = scmp.ne.s32.totalorder %s160, %s161
    %p170 = scmp.eq.s32.totalorder %s19, 0
    %p171 = por %p169, %p170
    %p172 = scmp.ne.s32.totalorder %s160, %s161
    %p173 = scmp.eq.s32.totalorder %s20, 1
    %p174 = por %p172, %p173
    %p176 = scmp.ne.s32.totalorder %s161, %s175
    %p177 = scmp.eq.s32.totalorder %s20, 0
    %p178 = por %p176, %p177
    %s180 = sadd.s32 %s179, 1
    %p183 = scmp.eq.s32.totalorder %s14, 1
    %p184 = scmp.ne.s32.totalorder %s179, %s181
    %p185 = scmp.eq.s32.totalorder %s14, 0
    %p186 = por %p184, %p185
    %p187 = scmp.ne.s32.totalorder %s179, %s181
    %p188 = scmp.eq.s32.totalorder %s19, 1
    %p189 = por %p187, %p188
    %p190 = scmp.ne.s32.totalorder %s181, %s182
    %p191 = scmp.eq.s32.totalorder %s19, 0
    %p192 = por %p190, %p191
    %p193 = scmp.ne.s32.totalorder %s181, %s182
    %p194 = scmp.eq.s32.totalorder %s20, 1
    %p195 = por %p193, %p194
    %p197 = scmp.ne.s32.totalorder %s182, %s196
    %p198 = scmp.eq.s32.totalorder %s20, 0
    %p199 = por %p197, %p198
    %s200 = ssub.s32 %s14, %s21
    %p201 = scmp.eq.s32.totalorder %s200, 0
    %s203 = sadd.s32 %s202, 1
    %s204 = scalar_select %p201, %s202, %s203
    %p207 = pneg %p201
    %p208 = scmp.eq.s32.totalorder %s14, 1
    %p209 = por %p207, %p208
    %p210 = scmp.ne.s32.totalorder %s202, %s205
    %p211 = scmp.eq.s32.totalorder %s14, 0
    %p212 = por %p210, %p211
    %p213 = scmp.ne.s32.totalorder %s202, %s205
    %p214 = scmp.eq.s32.totalorder %s19, 1
    %p215 = por %p213, %p214
    %p216 = scmp.ne.s32.totalorder %s205, %s206
    %p217 = scmp.eq.s32.totalorder %s19, 0
    %p218 = por %p216, %p217
    %p219 = scmp.ne.s32.totalorder %s205, %s206
    %p220 = scmp.eq.s32.totalorder %s20, 1
    %p221 = por %p219, %p220
    %p223 = scmp.ne.s32.totalorder %s206, %s222
    %p224 = scmp.eq.s32.totalorder %s20, 0
    %p225 = por %p223, %p224
    %p226 = scmp.le.s32.totalorder 1, %s14
    %p227 = scmp.lt.s32.totalorder %s14, 3
    %p228 = pnand %p226, %p227
    %p229 = pneg %p228
    // Predicated region
    $region9: #{resnet_block_bn.3} parent=5 // pred_check
      _
    $region10: #{resnet_block_bn.3} parent=5 // pred_check_branch
      %231 = sbr.rel (%p228) target = $region12
    $region11: #{resnet_block_bn.3} parent=5 // pred_region
      %s232 = ssub.s32 %s14, 1
      // Predicated region
      $region13: #{resnet_block_bn.3} parent=11 // pred_check
        %p233 = pneg %p87
      $region14: #{resnet_block_bn.3} parent=11 // pred_check_branch
        %235 = sbr.rel (%p233) target = $region16
      $region15: #{resnet_block_bn.3} parent=11 // pred_region
        _
      $region16: #{resnet_block_bn.3} parent=11 // pred_fallthru
        _
      // Predicated region
      $region17: #{resnet_block_bn.3} parent=11 // pred_check
        %p236 = pneg %p108
      $region18: #{resnet_block_bn.3} parent=11 // pred_check_branch
        %238 = sbr.rel (%p236) target = $region20
      $region19: #{resnet_block_bn.3} parent=11 // pred_region
        _
      $region20: #{resnet_block_bn.3} parent=11 // pred_fallthru
        _
      // Predicated region
      $region21: #{resnet_block_bn.3} parent=11 // pred_check
        %p239 = pneg %p129
      $region22: #{resnet_block_bn.3} parent=11 // pred_check_branch
        %241 = sbr.rel (%p239) target = $region24
      $region23: #{resnet_block_bn.3} parent=11 // pred_region
        _
      $region24: #{resnet_block_bn.3} parent=11 // pred_fallthru
        _
      // Predicated region
      $region25: #{resnet_block_bn.3} parent=11 // pred_check
        %p242 = pneg %p150
      $region26: #{resnet_block_bn.3} parent=11 // pred_check_branch
        %244 = sbr.rel (%p242) target = $region28
      $region27: #{resnet_block_bn.3} parent=11 // pred_region
        _
      $region28: #{resnet_block_bn.3} parent=11 // pred_fallthru
        _
      // Predicated region
      $region29: #{resnet_block_bn.3} parent=11 // pred_check
        %p245 = pneg %p171
      $region30: #{resnet_block_bn.3} parent=11 // pred_check_branch
        %247 = sbr.rel (%p245) target = $region32
      $region31: #{resnet_block_bn.3} parent=11 // pred_region
        _
      $region32: #{resnet_block_bn.3} parent=11 // pred_fallthru
        _
      // Predicated region
      $region33: #{resnet_block_bn.3} parent=11 // pred_check
        %p248 = pneg %p192
      $region34: #{resnet_block_bn.3} parent=11 // pred_check_branch
        %250 = sbr.rel (%p248) target = $region36
      $region35: #{resnet_block_bn.3} parent=11 // pred_region
        _
      $region36: #{resnet_block_bn.3} parent=11 // pred_fallthru
        _
    $region12: #{resnet_block_bn.3} parent=5 // pred_fallthru
      _
    %p251 = scmp.lt.s32.totalorder %s14, 2
    // Predicated region
    $region37: #{resnet_block_bn.3} parent=5 // pred_check
      %p252 = pneg %p251
    $region38: #{resnet_block_bn.3} parent=5 // pred_check_branch
      %254 = sbr.rel (%p252) target = $region40
    $region39: #{resnet_block_bn.3} parent=5 // pred_region
      // Predicated region
      $region41: #{resnet_block_bn.3} parent=39 // pred_check
        %p255 = pneg %p34
      $region42: #{resnet_block_bn.3} parent=39 // pred_check_branch
        %257 = sbr.rel (%p255) target = $region44
      $region43: #{resnet_block_bn.3} parent=39 // pred_region
        %p258 = scmp.lt.s32.totalorder %s14, 1
        %s259 = scalar_select %p258, %s14, 1
        %s260 = smul.addr %s259, 2
        %s261 = smul.addr %s260, 8
        %s262 = scalar_lea.vmem %s0, %s261
      $region44: #{resnet_block_bn.3} parent=39 // pred_fallthru
        _
      // Predicated region
      $region45: #{resnet_block_bn.3} parent=39 // pred_check
        %p263 = pneg %p60
      $region46: #{resnet_block_bn.3} parent=39 // pred_check_branch
        %265 = sbr.rel (%p263) target = $region48
      $region47: #{resnet_block_bn.3} parent=39 // pred_region
        %p266 = scmp.lt.s32.totalorder %s14, 1
        %s267 = scalar_select %p266, %s14, 1
        %s268 = smul.addr %s267, 2
        %s269 = smul.addr %s268, 8
        %s270 = scalar_lea.vmem %s1, %s269
      $region48: #{resnet_block_bn.3} parent=39 // pred_fallthru
        _
    $region40: #{resnet_block_bn.3} parent=5 // pred_fallthru
      _
    %p271 = scmp.le.s32.totalorder 1, %s14
    %p272 = scmp.lt.s32.totalorder %s14, 3
    %p273 = pnand %p271, %p272
    %p274 = pneg %p273
    // Predicated region
    $region49: #{resnet_block_bn.3} parent=5 // pred_check
      _
    $region50: #{resnet_block_bn.3} parent=5 // pred_check_branch
      %276 = sbr.rel (%p273) target = $region52
    $region51: #{resnet_block_bn.3} parent=5 // pred_region
      %s277 = ssub.s32 %s14, 1
      %p278 = scmp.lt.s32.totalorder %s19, 1
      %s279 = scalar_select %p278, %s19, 1
      %s280 = smul.addr %s279, 2
      %s281 = smul.addr %s280, 8
      %s282 = scalar_lea.vmem %s0, %s281
      %p283 = pneg %p40
      %p284 = pneg %p37
      %p285 = scmp.lt.s32.totalorder %s19, 1
      %s286 = scalar_select %p285, %s19, 1
      %s287 = smul.addr %s286, 2
      %s288 = smul.addr %s287, 8
      %s289 = scalar_lea.vmem %s1, %s288
      %p290 = pneg %p66
      %p291 = pneg %p63
      %p292 = pneg %p87
      %p293 = pneg %p84
      %p294 = pneg %p108
      %p295 = pneg %p105
      %p296 = pneg %p129
      %p297 = pneg %p126
      %p298 = pneg %p150
      %p299 = pneg %p147
      %p300 = pneg %p171
      %p301 = pneg %p168
      %p302 = pneg %p192
      %p303 = pneg %p189
      %p304 = pneg %p218
      %p305 = pneg %p215
      %p306 = scmp.lt.s32.totalorder %s19, 1
      %s307 = scalar_select %p306, %s19, 1
      %s308 = smul.addr %s307, 2
      %s309 = smul.addr %s308, 8
      %s310 = scalar_lea.vmem %s8, %s309
      %p311 = scmp.lt.s32.totalorder %s19, 1
      %s312 = scalar_select %p311, %s19, 1
      %s313 = smul.addr %s312, 2
      %s314 = smul.addr %s313, 8
      %s315 = scalar_lea.vmem %s0, %s314
      %p316 = scmp.lt.s32.totalorder %s19, 1
      %s317 = scalar_select %p316, %s19, 1
      %s318 = smul.addr %s317, 2
      %s319 = smul.addr %s318, 8
      %s320 = scalar_lea.vmem %s1, %s319
      %p321 = scmp.lt.s32.totalorder %s19, 1
      %s322 = scalar_select %p321, %s19, 1
      %s323 = smul.addr %s322, 2
      %s324 = smul.addr %s323, 8
      %s325 = scalar_lea.vmem %s8, %s324
      %v326 = vld [vmem:[%s6] sm:$0xff]
      %v327 = vld [vmem:[%s6 + $0x8] sm:$0xff]
      %v328 = vadd.f32 %v326, %v327
      %v329 = vmul.f32 %v328, 0.001953125
      %v330 = vmul.f32 %v329, %v329
      %332 = vrot.lane.b32.xlu0 %v330, 1
      %v333 = vpop.permute.xlu0 %332
      %v335 = vsub.f32 %v329, %v333
      %v336 = vld [vmem:[%s4] sm:$0xff]
      %v337 = vadd.f32 %v335, 1e-05
      %v338 = vrsqrt.pop %v337
      %v339 = vmul.f32 %v338, %v337
      %v340 = vmul.f32 %v339, %v338
      %v341 = vmul.f32 0.5, %v340
      %v342 = vsub.f32 1.5, %v341
      %v343 = vmul.f32 %v338, %v342
      %vm344 = vweird.f32 %v337
      %vm345 = vweird.f32 %v338
      %vm346 = vmor %vm344, %vm345
      %v347 = vsel %vm346, %v338, %v343
      %349 = vrot.lane.b32.xlu0 %v347, 127
      %v350 = vpop.permute.xlu0 %349
      %v352 = vmul.f32 %v336, %v350
      %v353 = vld [vmem:[%s5] sm:$0xff]
      %v354 = vmul.f32 %v329, %v352
      %v355 = vsub.f32 %v353, %v354
      %v356 = vld [vmem:[%s315] sm:$0xff]
      %v357 = vld [vmem:[%s315 + $0x8] sm:$0xff]
      %359 = vset.pattern.permute.xlu0 0
      %360 = vperm.xlu0 %359, %v352
      %v361 = vpop.permute.xlu0 %360
      %v363 = vmul.f32 %v356, %v361
      %v364 = vmul.f32 %v357, %v361
      %366 = vset.pattern.permute.xlu0 0
      %367 = vperm.xlu0 %366, %v355
      %v368 = vpop.permute.xlu0 %367
      %v370 = vadd.f32 %v363, %v368
      %v371 = vadd.f32 %v364, %v368
      %v372 = vmax.f32 %v370, 0.0
      %v373 = vmax.f32 %v371, 0.0
      %v374 = vld [vmem:[%s7] sm:$0xff]
      %v375 = vld [vmem:[%s7 + $0x8] sm:$0xff]
      %v376 = vld [vmem:[%s7 + $0x10] sm:$0x1]
      %v377 = vld [vmem:[%s7 + $0x18] sm:$0x1]
      %378 = vrot.lane.b32.xlu0 %v372, 34
      %v379 = vpop.permute.xlu0 %378
      %380 = vrot.lane.b32.xlu0 %v373, 34
      %v381 = vpop.permute.xlu0 %380
      %v382 = vlaneseq
      %v383 = vand.u32 %v382, 127
      %vm384 = vcmp.lt.s32.totalorder %v383, 34
      %v385 = vsel %vm384, %v379, %v381
      %v386 = vsel %vm384, %v381, %v379
      %v387 = vperm.slane %v374, 0
      %v388 = vperm.slane %v375, 0
      %v389 = vmul.f32 %v386, %v387
      %v390 = vmul.f32 %v385, %v388
      %391 = vrot.lane.b32.xlu0 %v372, 32
      %v392 = vpop.permute.xlu0 %391
      %393 = vrot.lane.b32.xlu0 %v373, 32
      %v394 = vpop.permute.xlu0 %393
      %vm395 = vcmp.lt.s32.totalorder %v383, 32
      %v396 = vsel %vm395, %v392, %v394
      %v397 = vsel %vm395, %v394, %v392
      %v398 = vperm.slane %v374, 1
      %v399 = vperm.slane %v375, 1
      %v400 = vmul.f32 %v397, %v398
      %v401 = vmul.f32 %v396, %v399
      %402 = vrot.lane.b32.xlu0 %v372, 30
      %v403 = vpop.permute.xlu0 %402
      %404 = vrot.lane.b32.xlu0 %v373, 30
      %v405 = vpop.permute.xlu0 %404
      %vm406 = vcmp.lt.s32.totalorder %v383, 30
      %v407 = vsel %vm406, %v403, %v405
      %v408 = vsel %vm406, %v405, %v403
      %v409 = vperm.slane %v374, 2
      %v410 = vperm.slane %v375, 2
      %v411 = vmul.f32 %v408, %v409
      %v412 = vmul.f32 %v407, %v410
      %413 = vrot.lane.b32.xlu0 %v372, 2
      %v414 = vpop.permute.xlu0 %413
      %415 = vrot.lane.b32.xlu0 %v373, 2
      %v416 = vpop.permute.xlu0 %415
      %vm417 = vcmp.lt.s32.totalorder %v383, 2
      %v418 = vsel %vm417, %v414, %v416
      %v419 = vsel %vm417, %v416, %v414
      %v420 = vperm.slane %v374, 3
      %v421 = vperm.slane %v375, 3
      %v422 = vmul.f32 %v419, %v420
      %v423 = vmul.f32 %v418, %v421
      %424 = vrot.lane.b32.xlu0 %v372, 126
      %v425 = vpop.permute.xlu0 %424
      %426 = vrot.lane.b32.xlu0 %v373, 126
      %v427 = vpop.permute.xlu0 %426
      %vm428 = vcmp.lt.s32.totalorder %v383, 126
      %v429 = vsel %vm428, %v425, %v427
      %v430 = vsel %vm428, %v427, %v425
      %v431 = vperm.slane %v374, 5
      %v432 = vperm.slane %v375, 5
      %v433 = vmul.f32 %v429, %v431
      %v434 = vmul.f32 %v430, %v432
      %435 = vrot.lane.b32.xlu0 %v372, 98
      %v436 = vpop.permute.xlu0 %435
      %437 = vrot.lane.b32.xlu0 %v373, 98
      %v438 = vpop.permute.xlu0 %437
      %vm439 = vcmp.lt.s32.totalorder %v383, 98
      %v440 = vsel %vm439, %v436, %v438
      %v441 = vsel %vm439, %v438, %v436
      %v442 = vperm.slane %v374, 6
      %v443 = vperm.slane %v375, 6
      %v444 = vmul.f32 %v440, %v442
      %v445 = vmul.f32 %v441, %v443
      %446 = vrot.lane.b32.xlu0 %v372, 96
      %v447 = vpop.permute.xlu0 %446
      %448 = vrot.lane.b32.xlu0 %v373, 96
      %v449 = vpop.permute.xlu0 %448
      %vm450 = vcmp.lt.s32.totalorder %v383, 96
      %v451 = vsel %vm450, %v447, %v449
      %v452 = vsel %vm450, %v449, %v447
      %v453 = vperm.slane %v374, 7
      %v454 = vperm.slane %v375, 7
      %v455 = vmul.f32 %v451, %v453
      %v456 = vmul.f32 %v452, %v454
      %457 = vrot.lane.b32.xlu0 %v372, 94
      %v458 = vpop.permute.xlu0 %457
      %459 = vrot.lane.b32.xlu0 %v373, 94
      %v460 = vpop.permute.xlu0 %459
      %vm461 = vcmp.lt.s32.totalorder %v383, 94
      %v462 = vsel %vm461, %v458, %v460
      %v463 = vsel %vm461, %v460, %v458
      %v464 = vperm.slane %v376, 0
      %v465 = vperm.slane %v377, 0
      %v466 = vmul.f32 %v462, %v464
      %v467 = vmul.f32 %v463, %v465
      %v468 = vld [vmem:[%s2] sm:$0xff]
      %v469 = vld [vmem:[%s3] sm:$0xff]
      %471 = vset.pattern.permute.xlu0 0
      %472 = vperm.xlu0 %471, %v469
      %v473 = vpop.permute.xlu0 %472
      %vm475 = vcmask 588800
      %v477 = vsel %vm475, %v468, 0
      %479 = vmatpush.msra.mxu0 0.0
      %480 = vmatpush.msra.mxu0 0.0
      %481 = vmatpush.msra.mxu0 0.0
      %482 = vmatpush.msra.mxu0 0.0
      %483 = vmatpush.msra.mxu0 0.0
      %484 = vmatpush.msra.mxu0 0.0
      %485 = vmatpush.msra.mxu0 0.0
      %486 = vmatpush.msra.mxu0 %v466
      %487 = vmatpush.msra.mxu0 %v455
      %488 = vmatpush.msra.mxu0 %v444
      %489 = vmatpush.msra.mxu0 %v433
      %490 = vmatpush.msra.mxu0 %v372
      %491 = vmatpush.msra.mxu0 %v422
      %492 = vmatpush.msra.mxu0 %v411
      %493 = vmatpush.msra.mxu0 %v400
      %494 = vmatpush.msra.mxu0 %v389
      %495 = vmatmul.f32.gmra.mxu0 %v477
      %v496 = vpop.f32.mrf.mxu0
      %v497 = vadd.f32 %v473, %v496
      %498 = vdwg.mxu0
      %499 = vmatpush.msra.mxu0 0.0
      %500 = vmatpush.msra.mxu0 0.0
      %501 = vmatpush.msra.mxu0 0.0
      %502 = vmatpush.msra.mxu0 0.0
      %503 = vmatpush.msra.mxu0 0.0
      %504 = vmatpush.msra.mxu0 0.0
      %505 = vmatpush.msra.mxu0 0.0
      %506 = vmatpush.msra.mxu0 %v467
      %507 = vmatpush.msra.mxu0 %v456
      %508 = vmatpush.msra.mxu0 %v445
      %509 = vmatpush.msra.mxu0 %v434
      %510 = vmatpush.msra.mxu0 %v373
      %511 = vmatpush.msra.mxu0 %v423
      %512 = vmatpush.msra.mxu0 %v412
      %513 = vmatpush.msra.mxu0 %v401
      %514 = vmatpush.msra.mxu0 %v390
      %515 = vmatmul.f32.gmra.mxu0 %v477
      %v516 = vpop.f32.mrf.mxu0
      %v517 = vadd.f32 %v473, %v516
      %518 = vdwg.mxu0
      %v519 = vld [vmem:[%s320] sm:$0xff]
      %v520 = vld [vmem:[%s320 + $0x8] sm:$0xff]
      %v521 = vadd.f32 %v497, %v519
      %v522 = vadd.f32 %v517, %v520
      %523 = vst [vmem:[%s325] sm:$0xff] %v521
      %524 = vst [vmem:[%s325 + $0x8] sm:$0xff] %v522
      %p525 = scmp.lt.s32.totalorder %s19, 1
      %s526 = scalar_select %p525, %s19, 1
      %s527 = smul.addr %s526, 2
      %s528 = smul.addr %s527, 8
      %s529 = scalar_lea.vmem %s8, %s528
      // Predicated region
      $region53: #{resnet_block_bn.3} parent=51 // pred_check
        %p530 = pneg %p215
      $region54: #{resnet_block_bn.3} parent=51 // pred_check_branch
        %532 = sbr.rel (%p530) target = $region56
      $region55: #{resnet_block_bn.3} parent=51 // pred_region
        _
      $region56: #{resnet_block_bn.3} parent=51 // pred_fallthru
        _
    $region52: #{resnet_block_bn.3} parent=5 // pred_fallthru
      _
    %p533 = scmp.le.s32.totalorder 2, %s14
    // Predicated region
    $region57: #{resnet_block_bn.3} parent=5 // pred_check
      %p534 = pneg %p533
    $region58: #{resnet_block_bn.3} parent=5 // pred_check_branch
      %536 = sbr.rel (%p534) target = $region60
    $region59: #{resnet_block_bn.3} parent=5 // pred_region
      %s537 = ssub.s32 %s14, 2
      // Predicated region
      $region61: #{resnet_block_bn.3} parent=59 // pred_check
        %p538 = pneg %p221
      $region62: #{resnet_block_bn.3} parent=59 // pred_check_branch
        %540 = sbr.rel (%p538) target = $region64
      $region63: #{resnet_block_bn.3} parent=59 // pred_region
        %p541 = scmp.lt.s32.totalorder %s20, 1
        %s542 = scalar_select %p541, %s20, 1
        %s543 = smul.addr %s542, 2
        %s544 = smul.addr %s543, 8
        %s545 = scalar_lea.vmem %s8, %s544
      $region64: #{resnet_block_bn.3} parent=59 // pred_fallthru
        _
    $region60: #{resnet_block_bn.3} parent=5 // pred_fallthru
      _
  $region6: #{resnet_block_bn.3} parent=0 // loop_footer
    %s18 = sadd.s32 1, %s14
  $region7: #{resnet_block_bn.3} parent=0 // loop_footer_branch
    %13 = sbr.rel target = $region3
  $region8: #{resnet_block_bn.3} parent=0 // loop_exit
    _

</llo_original>
